<compile_context>
chip_gen: v6e
topology: v6e:2x2x1
jax: 0.10.0
libtpu: 0.0.40
codegen_flags: <defaults>
</compile_context>

<pallas_src>
import numpy as np
import jax
import jax.numpy as jnp
from jax.experimental import pallas as pl
from jax.experimental.pallas import tpu as pltpu


# ----------------------------- kernel body ---------------------------------

def _box_filter_kernel(x_ref, bh_ref, bw_ref, o_ref):
    cblk, H, W = x_ref.shape
    bh = bh_ref[...]                       # (H, H) symmetric band matrix (torch dim 2)
    bw = bw_ref[...]                       # (W, W) symmetric band matrix (torch dim 3)

    # ---- row box-sum (torch dim 2), channels folded into M ----
    # Bh is symmetric, so (Bh @ X[c])^T == X[c]^T @ Bh.  One minor-dim transpose
    # (XLU) + a single (cblk*W, H) @ (H, H) MXU matmul replaces cblk small
    # (H,H)@(H,W) matmuls.
    xt = jnp.swapaxes(x_ref[...], 1, 2)                    # (cblk, W, H)
    yt = jnp.dot(xt.reshape(cblk * W, H), bh,
                 preferred_element_type=jnp.float32)       # (cblk*W, H) == (Bh@X)^T

    # ---- column box-sum (torch dim 3), layout-preserving ----
    y = jnp.swapaxes(yt.reshape(cblk, W, H), 1, 2)         # (cblk, H, W) == Bh @ X
    out = jnp.dot(y.reshape(cblk * H, W), bw,
                  preferred_element_type=jnp.float32)      # (cblk*H, W)
    o_ref[...] = out.reshape(cblk, H, W).astype(o_ref.dtype)


# ----------------------------- host helpers --------------------------------

def _band_matrix(n, r):
    # B[i, j] = 1 iff |i - j| <= r  (clamped box window; algebraically equal to
    # the cumsum+diff_x / diff_y chain of the PyTorch module).
    idx = np.arange(n)
    return (np.abs(idx[:, None] - idx[None, :]) <= r).astype(np.float32)


def _round_up(x, m):
    return (x + m - 1) // m * m


def _vmem_capacity_bytes():
    """Physical VMEM per core; conservative (v7x-sized) fallback if unknown."""
    try:
        info = pltpu.get_tpu_info()
        cap = getattr(info, "vmem_capacity_bytes", None)
        if cap:
            return int(cap)
    except Exception:
        pass
    return 64 * 1024 * 1024


def _pick_channel_block(B, C, H, W, itemsize, vmem_cap):
    """Largest divisor of C whose (8,128)-padded working set fits the budget."""
    budget = int(0.55 * vmem_cap)          # headroom for Mosaic internal scratch
    Hp, Wp = _round_up(H, 8), _round_up(W, 128)
    band_bytes = (_round_up(H, 8) * _round_up(H, 128)
                  + _round_up(W, 8) * _round_up(W, 128)) * 4 * 2   # conservative 2x

    def fits(c):
        blk_io = 2 * 2 * c * Hp * Wp * itemsize      # double-buffered x and out blocks
        interm = 4 * c * Hp * Wp * 4                 # f32 xt/yt/y/out live at peaks
        return blk_io + interm + band_bytes <= budget

    best = 1
    for c in range(1, C + 1):
        if C % c == 0 and fits(c):
            best = c

    # Keep >= 2 grid steps so v7x's two TensorCores both get work.
    while best > 1 and B * (C // best) < 2:
        best = max(d for d in range(1, best) if C % d == 0)
    return best


_BAND_SINGLE_BUFFER_MIN_BYTES = 1 << 20    # only bother below ~1 MiB per matrix


def _band_spec(shape, itemsize):
    index_map = lambda b, c: (0, 0)
    if shape[0] * shape[1] * itemsize >= _BAND_SINGLE_BUFFER_MIN_BYTES:
        # Constant-index input: single-buffer it so default double-buffering
        # doesn't burn 2x(H^2+W^2) bytes of dead VMEM on large frames.
        try:
            return pl.BlockSpec(shape, index_map, pipeline_mode=pl.Buffered(1))
        except TypeError:
            pass
    return pl.BlockSpec(shape, index_map)


# ----------------------------- public entry --------------------------------

def box_filter(x, r):
    B, C, H, W = x.shape
    assert H >= 2 * r + 1 and W >= 2 * r + 1

    # 0/1 band matrices are exact in bf16; keep f32 otherwise so results match
    # the f32 reference bit-for-bit up to matmul accumulation order.
    band_dtype = jnp.bfloat16 if x.dtype == jnp.bfloat16 else jnp.float32
    bh = jnp.asarray(_band_matrix(H, r), dtype=band_dtype)
    bw = jnp.asarray(_band_matrix(W, r), dtype=band_dtype)

    vmem_cap = _vmem_capacity_bytes()
    cblk = _pick_channel_block(B, C, H, W, x.dtype.itemsize, vmem_cap)
    grid = (B, C // cblk)
    vmem_limit = int(0.8 * vmem_cap)       # ~102 MiB on 128 MiB parts, ~51 MiB on v7x

    return pl.pallas_call(
        _box_filter_kernel,
        out_shape=jax.ShapeDtypeStruct((B, C, H, W), x.dtype),
        grid=grid,
        in_specs=[
            pl.BlockSpec((None, cblk, H, W), lambda b, c: (b, c, 0, 0)),
            _band_spec((H, H), bh.dtype.itemsize),
            _band_spec((W, W), bw.dtype.itemsize),
        ],
        out_specs=pl.BlockSpec((None, cblk, H, W), lambda b, c: (b, c, 0, 0)),
        compiler_params=pltpu.CompilerParams(
            dimension_semantics=("parallel", "parallel"),
            vmem_limit_bytes=vmem_limit),
    )(x, bh, bw)


# ---- pure-JAX reference (direct transcription of the PyTorch module) ----

def _diff_x_ref(a, r):
    left = a[:, :, r:2 * r + 1]
    middle = a[:, :, 2 * r + 1:] - a[:, :, :-2 * r - 1]
    right = a[:, :, -1:] - a[:, :, -2 * r - 1:-r - 1]
    return jnp.concatenate([left, middle, right], axis=2)


def _diff_y_ref(a, r):
    left = a[:, :, :, r:2 * r + 1]
    middle = a[:, :, :, 2 * r + 1:] - a[:, :, :, :-2 * r - 1]
    right = a[:, :, :, -1:] - a[:, :, :, -2 * r - 1:-r - 1]
    return jnp.concatenate([left, middle, right], axis=3)


def box_filter_ref(x, r):
    return _diff_y_ref(_diff_x_ref(jnp.cumsum(x, axis=2), r).cumsum(axis=3), r)


# ----------------------------------- test -----------------------------------

if __name__ == "__main__":
    configs = [
        ((2, 4, 16, 16), 2),    # primary small test
        ((1, 3, 24, 40), 3),    # H != W, B=1 (grid still split across cores)
        ((1, 2, 16, 16), 7),    # r near its maximum (2r+1 = 15 <= 16)
    ]

    key = jax.random.PRNGKey(0)
    for shape, r in configs:
        key, sub = jax.random.split(key)
        x = jax.random.normal(sub, shape, dtype=jnp.float32)

        out = jax.block_until_ready(box_filter(x, r))
        ref = box_filter_ref(x, r)

        assert out.shape == ref.shape and out.dtype == ref.dtype
        np.testing.assert_allclose(np.asarray(out), np.asarray(ref),
                                   rtol=1e-5, atol=1e-4)

    print("KERNEL_OK")
</pallas_src>

<mosaic_0001>
module attributes {stable_mosaic.version = 11 : i64} {
  func.func @_box_filter_kernel(%arg0: i32, %arg1: i32, %arg2: memref<1x4x16x16xf32, #tpu.memory_space<vmem>>, %arg3: memref<16x16xf32, #tpu.memory_space<vmem>>, %arg4: memref<16x16xf32, #tpu.memory_space<vmem>>, %arg5: memref<1x4x16x16xf32, #tpu.memory_space<vmem>>) attributes {dimension_semantics = [#tpu.dimension_semantics<parallel>, #tpu.dimension_semantics<parallel>], iteration_bounds = array<i64: 2, 1>, scalar_prefetch = 0 : i64, scratch_operands = 0 : i64, tpu.core_type = #tpu.core_type<tc>, window_params = [{transform_indices = @transform_0, window_bounds = array<i64: 1, 4, 16, 16>}, {pipeline_mode = #tpu.pipeline_mode<synchronous>, transform_indices = @transform_1, window_bounds = array<i64: 16, 16>}, {pipeline_mode = #tpu.pipeline_mode<synchronous>, transform_indices = @transform_2, window_bounds = array<i64: 16, 16>}, {transform_indices = @transform_3, window_bounds = array<i64: 1, 4, 16, 16>}]} {
    %c0 = arith.constant 0 : index
    %c0_0 = arith.constant 0 : index
    %0 = vector.load %arg3[%c0, %c0_0] : memref<16x16xf32, #tpu.memory_space<vmem>>, vector<16x16xf32>
    %c0_1 = arith.constant 0 : index
    %c0_2 = arith.constant 0 : index
    %1 = vector.load %arg4[%c0_1, %c0_2] : memref<16x16xf32, #tpu.memory_space<vmem>>, vector<16x16xf32>
    %c0_3 = arith.constant 0 : index
    %c0_4 = arith.constant 0 : index
    %c0_5 = arith.constant 0 : index
    %c0_6 = arith.constant 0 : index
    %2 = vector.load %arg2[%c0_3, %c0_4, %c0_5, %c0_6] : memref<1x4x16x16xf32, #tpu.memory_space<vmem>>, vector<1x4x16x16xf32>
    %3 = vector.shape_cast %2 : vector<1x4x16x16xf32> to vector<4x16x16xf32>
    %4 = tpu.transpose %3, [0, 2, 1] : vector<4x16x16xf32> -> vector<4x16x16xf32>
    %5 = vector.shape_cast %4 : vector<4x16x16xf32> to vector<64x16xf32>
    %cst = arith.constant dense<0.000000e+00> : vector<64x16xf32>
    %6 = tpu.matmul %5, %0, %cst {dimension_numbers = #tpu.dot_dimension_numbers<[1], [0], [0], [1], [0, 0, 1, 1], [], []>} : vector<64x16xf32>, vector<16x16xf32>, vector<64x16xf32> -> vector<64x16xf32>
    %7 = vector.shape_cast %6 : vector<64x16xf32> to vector<4x16x16xf32>
    %8 = tpu.transpose %7, [0, 2, 1] : vector<4x16x16xf32> -> vector<4x16x16xf32>
    %9 = vector.shape_cast %8 : vector<4x16x16xf32> to vector<64x16xf32>
    %cst_7 = arith.constant dense<0.000000e+00> : vector<64x16xf32>
    %10 = tpu.matmul %9, %1, %cst_7 {dimension_numbers = #tpu.dot_dimension_numbers<[1], [0], [0], [1], [0, 0, 1, 1], [], []>} : vector<64x16xf32>, vector<16x16xf32>, vector<64x16xf32> -> vector<64x16xf32>
    %11 = vector.shape_cast %10 : vector<64x16xf32> to vector<4x16x16xf32>
    %c0_8 = arith.constant 0 : index
    %c0_9 = arith.constant 0 : index
    %c0_10 = arith.constant 0 : index
    %c0_11 = arith.constant 0 : index
    %12 = vector.load %arg5[%c0_8, %c0_9, %c0_10, %c0_11] : memref<1x4x16x16xf32, #tpu.memory_space<vmem>>, vector<1x4x16x16xf32>
    %13 = vector.shape_cast %12 : vector<1x4x16x16xf32> to vector<4x16x16xf32>
    %14 = vector.shape_cast %11 : vector<4x16x16xf32> to vector<1x4x16x16xf32>
    tpu.vector_store %arg5[%c0_8, %c0_9, %c0_10, %c0_11], %14 {strides = array<i32>} : memref<1x4x16x16xf32, #tpu.memory_space<vmem>>, vector<1x4x16x16xf32>,
    return
  }
  func.func @transform_0(%arg0: i32, %arg1: i32) -> (i32, i32, i32, i32) {
    %c0_i32 = arith.constant 0 : i32
    %c0_i32_0 = arith.constant 0 : i32
    %c0_i32_1 = arith.constant 0 : i32
    return %arg0, %arg1, %c0_i32, %c0_i32_0 : i32, i32, i32, i32
  }
  func.func @transform_1(%arg0: i32, %arg1: i32) -> (i32, i32) {
    %c0_i32 = arith.constant 0 : i32
    %c0_i32_0 = arith.constant 0 : i32
    %c0_i32_1 = arith.constant 0 : i32
    return %c0_i32, %c0_i32_0 : i32, i32
  }
  func.func @transform_2(%arg0: i32, %arg1: i32) -> (i32, i32) {
    %c0_i32 = arith.constant 0 : i32
    %c0_i32_0 = arith.constant 0 : i32
    %c0_i32_1 = arith.constant 0 : i32
    return %c0_i32, %c0_i32_0 : i32, i32
  }
  func.func @transform_3(%arg0: i32, %arg1: i32) -> (i32, i32, i32, i32) {
    %c0_i32 = arith.constant 0 : i32
    %c0_i32_0 = arith.constant 0 : i32
    %c0_i32_1 = arith.constant 0 : i32
    return %arg0, %arg1, %c0_i32, %c0_i32_0 : i32, i32, i32, i32
  }
}

</mosaic_0001>

<llo_original>
// kernel: tpu_custom_call.1
$region0: #{tpu_custom_call.1}
  #allocation0 [shape = 'u32[]', space=smem, size = 0x4, offset = 0x4, fixed_abs, tag = 'smem constant byte address 0x4 - core index']
  #allocation1 [shape = 'u32[144,128]{1,0:T(1,128)}', space=vmem, size = 0x12000, scoped, tag = 'internal scratch']
  %s0 = inlined_call_operand.hbm [shape: f32[2,4,16,16], index: 0, kind: input, shape index: {}]
  %s1 = inlined_call_operand.hbm [shape: f32[16,16], index: 1, kind: input, shape index: {}]
  %s2 = inlined_call_operand.hbm [shape: f32[16,16], index: 2, kind: input, shape index: {}]
  %s3 = inlined_call_operand.hbm [shape: f32[2,4,16,16], index: 3, kind: output, shape index: {}]
  %s4 = sld [smem:[#allocation0]]
  $region57: #{tpu_custom_call.1} parent=0
    _
  %s6 = ssub.s32 1, %s4
  %s7 = scalar_select 0, %s6, %s4
  $region1: #{tpu_custom_call.1} parent=0
    #allocation2 [shape = 'u8[65536]{0}', space=vmem, size = 0x10000, scoped, tag = 'input window, operand 0']
    #allocation3 [shape = 's32[2]{0}', space=sflag, size = 0x8, scoped, tag = 'scoped memory for tpu_custom_call.1']
    #allocation4 [shape = 's32[2]{0}', space=sflag, size = 0x8, scoped, tag = 'scoped memory for tpu_custom_call.1']
    #allocation5 [shape = 'u8[8192]{0}', space=vmem, size = 0x2000, scoped, tag = 'input window, operand 1, single buffered']
    #allocation6 [shape = 's32[1]{0}', space=sflag, size = 0x4, scoped, tag = 'scoped memory for tpu_custom_call.1']
    #allocation7 [shape = 'u8[8192]{0}', space=vmem, size = 0x2000, scoped, tag = 'input window, operand 2, single buffered']
    #allocation8 [shape = 'u8[65536]{0}', space=vmem, size = 0x10000, scoped, tag = 'output window, operand 0']
    %8 = vsyncpa [#allocation3], 0
    %s9 = scalar_lea.sflag [#allocation3], 1
    %10 = vsyncpa %s9, 0
    %11 = vsyncpa [#allocation6], 0
    %12 = vsyncpa [#allocation4], 0
    %s13 = scalar_lea.sflag [#allocation4], 1
    %14 = vsyncpa %s13, 0
    loop: start=0, step=1, limit=4
    $region2: #{tpu_custom_call.1} parent=1 // loop_pre_header
      _
    $region3: #{tpu_custom_call.1} parent=1 // loop_header
      %s16 = sphi 0, %s20
      %p17 = scmp.ge.s32.totalorder %s16, 4
      %s23 = sphi 0, %s35
      %s24 = sphi 0, %s31
      %s25 = sphi 0, %s23
      %s26 = sphi 0, %s24
      %s27 = sphi 0, %s25
      %s28 = sphi 0, %s26
      %s40 = sphi 0, %s42
      %s43 = sphi 0, %s40
      %s44 = sphi 0, %s43
      %s60 = sphi 0, %s44
      %s64 = sphi 0, %s64
      %s66 = sphi 0, %s64
      %s67 = sphi 0, %s66
      %s81 = sphi 0, %s67
      %s85 = sphi 0, %s85
      %s87 = sphi 0, %s85
      %s88 = sphi 0, %s87
      %s102 = sphi 0, %s88
      %s110 = sphi 0, %s112
      %s113 = sphi 0, %s110
      %s114 = sphi 0, %s113
      %s130 = sphi 0, %s114
    $region4: #{tpu_custom_call.1} parent=1 // loop_header_branch
      %19 = sbr.rel (%p17) target = $region8
    $region5: #{tpu_custom_call.1} parent=1 // loop_body
      %s21 = ssub.s32 %s16, 1
      %s22 = ssub.s32 %s16, 2
      %s29 = sadd.s32 1, %s24
      %p30 = scmp.ge.s32.totalorder %s29, 1
      %s31 = scalar_select %p30, 0, %s29
      %s32 = sadd.s32 1, %s23
      %s33 = scalar_select %p30, %s32, %s23
      %p34 = scmp.ge.s32.totalorder %s33, 2
      %s35 = scalar_select %p34, 0, %s33
      %s36 = ssub.s32 %s23, %s35
      %s37 = ssub.s32 %s24, %s31
      %s38 = sor.u32 %s36, %s37
      %p39 = scmp.eq.s32.totalorder %s38, 0
      %s41 = sadd.s32 %s40, 1
      %s42 = scalar_select %p39, %s40, %s41
      %p45 = pneg %p39
      %p46 = scmp.eq.s32.totalorder %s16, 1
      %p47 = por %p45, %p46
      %p48 = scmp.ne.s32.totalorder %s40, %s43
      %p49 = scmp.eq.s32.totalorder %s16, 0
      %p50 = por %p48, %p49
      %p51 = scmp.ne.s32.totalorder %s40, %s43
      %p52 = scmp.eq.s32.totalorder %s21, 1
      %p53 = por %p51, %p52
      %p54 = scmp.ne.s32.totalorder %s43, %s44
      %p55 = scmp.eq.s32.totalorder %s21, 0
      %p56 = por %p54, %p55
      %p57 = scmp.ne.s32.totalorder %s43, %s44
      %p58 = scmp.eq.s32.totalorder %s22, 1
      %p59 = por %p57, %p58
      %p61 = scmp.ne.s32.totalorder %s44, %s60
      %p62 = scmp.eq.s32.totalorder %s22, 0
      %p63 = por %p61, %p62
      %s65 = sadd.s32 %s64, 1
      %p68 = scmp.eq.s32.totalorder %s16, 1
      %p69 = scmp.ne.s32.totalorder %s64, %s66
      %p70 = scmp.eq.s32.totalorder %s16, 0
      %p71 = por %p69, %p70
      %p72 = scmp.ne.s32.totalorder %s64, %s66
      %p73 = scmp.eq.s32.totalorder %s21, 1
      %p74 = por %p72, %p73
      %p75 = scmp.ne.s32.totalorder %s66, %s67
      %p76 = scmp.eq.s32.totalorder %s21, 0
      %p77 = por %p75, %p76
      %p78 = scmp.ne.s32.totalorder %s66, %s67
      %p79 = scmp.eq.s32.totalorder %s22, 1
      %p80 = por %p78, %p79
      %p82 = scmp.ne.s32.totalorder %s67, %s81
      %p83 = scmp.eq.s32.totalorder %s22, 0
      %p84 = por %p82, %p83
      %s86 = sadd.s32 %s85, 1
      %p89 = scmp.eq.s32.totalorder %s16, 1
      %p90 = scmp.ne.s32.totalorder %s85, %s87
      %p91 = scmp.eq.s32.totalorder %s16, 0
      %p92 = por %p90, %p91
      %p93 = scmp.ne.s32.totalorder %s85, %s87
      %p94 = scmp.eq.s32.totalorder %s21, 1
      %p95 = por %p93, %p94
      %p96 = scmp.ne.s32.totalorder %s87, %s88
      %p97 = scmp.eq.s32.totalorder %s21, 0
      %p98 = por %p96, %p97
      %p99 = scmp.ne.s32.totalorder %s87, %s88
      %p100 = scmp.eq.s32.totalorder %s22, 1
      %p101 = por %p99, %p100
      %p103 = scmp.ne.s32.totalorder %s88, %s102
      %p104 = scmp.eq.s32.totalorder %s22, 0
      %p105 = por %p103, %p104
      %s106 = ssub.s32 %s23, %s35
      %s107 = ssub.s32 %s24, %s31
      %s108 = sor.u32 %s106, %s107
      %p109 = scmp.eq.s32.totalorder %s108, 0
      %s111 = sadd.s32 %s110, 1
      %s112 = scalar_select %p109, %s110, %s111
      %p115 = pneg %p109
      %p116 = scmp.eq.s32.totalorder %s16, 1
      %p117 = por %p115, %p116
      %p118 = scmp.ne.s32.totalorder %s110, %s113
      %p119 = scmp.eq.s32.totalorder %s16, 0
      %p120 = por %p118, %p119
      %p121 = scmp.ne.s32.totalorder %s110, %s113
      %p122 = scmp.eq.s32.totalorder %s21, 1
      %p123 = por %p121, %p122
      %p124 = scmp.ne.s32.totalorder %s113, %s114
      %p125 = scmp.eq.s32.totalorder %s21, 0
      %p126 = por %p124, %p125
      %p127 = scmp.ne.s32.totalorder %s113, %s114
      %p128 = scmp.eq.s32.totalorder %s22, 1
      %p129 = por %p127, %p128
      %p131 = scmp.ne.s32.totalorder %s114, %s130
      %p132 = scmp.eq.s32.totalorder %s22, 0
      %p133 = por %p131, %p132
      %p134 = scmp.le.s32.totalorder 1, %s16
      %p135 = scmp.lt.s32.totalorder %s16, 3
      %p136 = pnand %p134, %p135
      %p137 = pneg %p136
      // Predicated region
      $region9: #{tpu_custom_call.1} parent=5 // pred_check
        _
      $region10: #{tpu_custom_call.1} parent=5 // pred_check_branch
        %139 = sbr.rel (%p136) target = $region12
      $region11: #{tpu_custom_call.1} parent=5 // pred_region
        %s140 = ssub.s32 %s16, 1
        // Predicated region
        $region13: #{tpu_custom_call.1} parent=11 // pred_check
          %p141 = pneg %p77
        $region14: #{tpu_custom_call.1} parent=11 // pred_check_branch
          %143 = sbr.rel (%p141) target = $region16
        $region15: #{tpu_custom_call.1} parent=11 // pred_region
          %s145 = ssub.s32 256, 256
          %146 = vsyncadd [#allocation6], %s145
          %s147 = sshll.u32 [#allocation5], 4
          %s148 = int_to_ptr.vmem [resolvable:$true] %s147
          %153 = dma.hbm_to_vmem [thread:$0]  %s1, 256, %s148, [#allocation6], 128, 128, 8
        $region16: #{tpu_custom_call.1} parent=11 // pred_fallthru
          _
        // Predicated region
        $region17: #{tpu_custom_call.1} parent=11 // pred_check
          %p154 = pneg %p98
        $region18: #{tpu_custom_call.1} parent=11 // pred_check_branch
          %156 = sbr.rel (%p154) target = $region20
        $region19: #{tpu_custom_call.1} parent=11 // pred_region
          %s158 = ssub.s32 256, 256
          %159 = vsyncadd [#allocation6], %s158
          %s160 = sshll.u32 [#allocation7], 4
          %s161 = int_to_ptr.vmem [resolvable:$true] %s160
          %166 = dma.hbm_to_vmem [thread:$0]  %s2, 256, %s161, [#allocation6], 128, 128, 8
        $region20: #{tpu_custom_call.1} parent=11 // pred_fallthru
          _
      $region12: #{tpu_custom_call.1} parent=5 // pred_fallthru
        _
      %p167 = scmp.lt.s32.totalorder %s16, 2
      // Predicated region
      $region21: #{tpu_custom_call.1} parent=5 // pred_check
        %p168 = pneg %p167
      $region22: #{tpu_custom_call.1} parent=5 // pred_check_branch
        %170 = sbr.rel (%p168) target = $region24
      $region23: #{tpu_custom_call.1} parent=5 // pred_region
        // Predicated region
        $region25: #{tpu_custom_call.1} parent=23 // pred_check
          %p171 = pneg %p50
        $region26: #{tpu_custom_call.1} parent=23 // pred_check_branch
          %173 = sbr.rel (%p171) target = $region28
        $region27: #{tpu_custom_call.1} parent=23 // pred_region
          %s174 = sand.u32 %s40, 1
          %s175 = scalar_lea.sflag [#allocation3], %s174
          %s176 = sand.u32 %s40, 1
          %s177 = smul.addr %s176, 64
          %s178 = scalar_lea.vmem [#allocation2], %s177
          %s179 = smul.u32 4, %s24
          %s181 = ssub.s32 1024, 1024
          %182 = vsyncadd %s175, %s181
          %s183 = smul.addr %s179, 2
          %s184 = smul.addr %s23, 8
          %s185 = sadd.s32 %s183, %s184
          %s186 = smul.addr %s185, 128
          %s187 = scalar_lea.hbm %s0, %s186
          %s188 = sshll.u32 %s178, 4
          %s189 = int_to_ptr.vmem [resolvable:$true] %s188
          %194 = dma.hbm_to_vmem [thread:$0]  %s187, 1024, %s189, %s175, 128, 128, 8
        $region28: #{tpu_custom_call.1} parent=23 // pred_fallthru
          _
      $region24: #{tpu_custom_call.1} parent=5 // pred_fallthru
        _
      %p195 = scmp.le.s32.totalorder 1, %s16
      %p196 = scmp.lt.s32.totalorder %s16, 3
      %p197 = pnand %p195, %p196
      %p198 = pneg %p197
      // Predicated region
      $region29: #{tpu_custom_call.1} parent=5 // pred_check
        _
      $region30: #{tpu_custom_call.1} parent=5 // pred_check_branch
        %200 = sbr.rel (%p197) target = $region32
      $region31: #{tpu_custom_call.1} parent=5 // pred_region
        %s201 = ssub.s32 %s16, 1
        %s202 = sand.u32 %s43, 1
        %s203 = scalar_lea.sflag [#allocation3], %s202
        %s204 = sand.u32 %s43, 1
        %s205 = smul.addr %s204, 64
        %s206 = scalar_lea.vmem [#allocation2], %s205
        // Predicated region
        $region33: #{tpu_custom_call.1} parent=31 // pred_check
          %p207 = pneg %p56
        $region34: #{tpu_custom_call.1} parent=31 // pred_check_branch
          %209 = sbr.rel (%p207) target = $region36
        $region35: #{tpu_custom_call.1} parent=31 // pred_region
          %210 = dma.done %s203, 1024
        $region36: #{tpu_custom_call.1} parent=31 // pred_fallthru
          _
        // Predicated region
        $region37: #{tpu_custom_call.1} parent=31 // pred_check
          %p211 = pneg %p77
        $region38: #{tpu_custom_call.1} parent=31 // pred_check_branch
          %213 = sbr.rel (%p211) target = $region40
        $region39: #{tpu_custom_call.1} parent=31 // pred_region
          %214 = dma.done [#allocation6], 256
        $region40: #{tpu_custom_call.1} parent=31 // pred_fallthru
          _
        // Predicated region
        $region41: #{tpu_custom_call.1} parent=31 // pred_check
          %p215 = pneg %p98
        $region42: #{tpu_custom_call.1} parent=31 // pred_check_branch
          %217 = sbr.rel (%p215) target = $region44
        $region43: #{tpu_custom_call.1} parent=31 // pred_region
          %218 = dma.done [#allocation6], 256
        $region44: #{tpu_custom_call.1} parent=31 // pred_fallthru
          _
        %s219 = sand.u32 %s43, 1
        %s220 = scalar_lea.sflag [#allocation3], %s219
        %s221 = sand.u32 %s43, 1
        %s222 = smul.addr %s221, 64
        %s223 = scalar_lea.vmem [#allocation2], %s222
        %p224 = pneg %p56
        %p225 = pneg %p53
        %p226 = pneg %p77
        %p227 = pneg %p74
        %p228 = pneg %p98
        %p229 = pneg %p95
        %p230 = pneg %p126
        %p231 = pneg %p123
        %s232 = sand.u32 %s113, 1
        %s233 = scalar_lea.sflag [#allocation4], %s232
        %s234 = sand.u32 %s113, 1
        %s235 = smul.addr %s234, 64
        %s236 = scalar_lea.vmem [#allocation8], %s235
        %s237 = smul.u32 4, %s26
        %s238 = smul.u32 4, %s26
        %v239 = vld [vmem:[#allocation5] sm:$0xff]
        %v240 = vld [vmem:[#allocation5 + $0x8] sm:$0xff]
        %v241 = vld [vmem:[#allocation7] sm:$0xff]
        %v242 = vld [vmem:[#allocation7 + $0x8] sm:$0xff]
        %v243 = vld [vmem:[%s206] sm:$0xff]
        %v244 = vld [vmem:[%s206 + $0x8] sm:$0xff]
        %v245 = vld [vmem:[%s206 + $0x10] sm:$0xff]
        %v246 = vld [vmem:[%s206 + $0x18] sm:$0xff]
        %v247 = vld [vmem:[%s206 + $0x20] sm:$0xff]
        %v248 = vld [vmem:[%s206 + $0x28] sm:$0xff]
        %v249 = vld [vmem:[%s206 + $0x30] sm:$0xff]
        %v250 = vld [vmem:[%s206 + $0x38] sm:$0xff]
        %251 = vxpose.xlu0.b32.start [1/16] %v243, 128
        %252 = vxpose.xlu0.b32.cont [2/16] %v244, 128
        %253 = vxpose.xlu0.b32.cont [3/16] 0.0, 128
        %254 = vxpose.xlu0.b32.cont [4/16] 0.0, 128
        %255 = vxpose.xlu0.b32.cont [5/16] 0.0, 128
        %256 = vxpose.xlu0.b32.cont [6/16] 0.0, 128
        %257 = vxpose.xlu0.b32.cont [7/16] 0.0, 128
        %258 = vxpose.xlu0.b32.cont [8/16] 0.0, 128
        %259 = vxpose.xlu0.b32.cont [9/16] 0.0, 128
        %260 = vxpose.xlu0.b32.cont [10/16] 0.0, 128
        %261 = vxpose.xlu0.b32.cont [11/16] 0.0, 128
        %262 = vxpose.xlu0.b32.cont [12/16] 0.0, 128
        %263 = vxpose.xlu0.b32.cont [13/16] 0.0, 128
        %264 = vxpose.xlu0.b32.cont [14/16] 0.0, 128
        %265 = vxpose.xlu0.b32.cont [15/16] 0.0, 128
        %266 = vxpose.xlu0.b32.end [16/16] 0.0, 128
        %v267 = vpop.trf.xlu0
        %v268 = vpop.trf.xlu0
        %v269 = vpop.trf.xlu0
        %v270 = vpop.trf.xlu0
        %v271 = vpop.trf.xlu0
        %v272 = vpop.trf.xlu0
        %v273 = vpop.trf.xlu0
        %v274 = vpop.trf.xlu0
        %v275 = vpop.trf.xlu0
        %v276 = vpop.trf.xlu0
        %v277 = vpop.trf.xlu0
        %v278 = vpop.trf.xlu0
        %v279 = vpop.trf.xlu0
        %v280 = vpop.trf.xlu0
        %v281 = vpop.trf.xlu0
        %v282 = vpop.trf.xlu0
        %283 = vxpose.xlu0.b32.start [1/16] %v245, 128
        %284 = vxpose.xlu0.b32.cont [2/16] %v246, 128
        %285 = vxpose.xlu0.b32.cont [3/16] 0.0, 128
        %286 = vxpose.xlu0.b32.cont [4/16] 0.0, 128
        %287 = vxpose.xlu0.b32.cont [5/16] 0.0, 128
        %288 = vxpose.xlu0.b32.cont [6/16] 0.0, 128
        %289 = vxpose.xlu0.b32.cont [7/16] 0.0, 128
        %290 = vxpose.xlu0.b32.cont [8/16] 0.0, 128
        %291 = vxpose.xlu0.b32.cont [9/16] 0.0, 128
        %292 = vxpose.xlu0.b32.cont [10/16] 0.0, 128
        %293 = vxpose.xlu0.b32.cont [11/16] 0.0, 128
        %294 = vxpose.xlu0.b32.cont [12/16] 0.0, 128
        %295 = vxpose.xlu0.b32.cont [13/16] 0.0, 128
        %296 = vxpose.xlu0.b32.cont [14/16] 0.0, 128
        %297 = vxpose.xlu0.b32.cont [15/16] 0.0, 128
        %298 = vxpose.xlu0.b32.end [16/16] 0.0, 128
        %v299 = vpop.trf.xlu0
        %v300 = vpop.trf.xlu0
        %v301 = vpop.trf.xlu0
        %v302 = vpop.trf.xlu0
        %v303 = vpop.trf.xlu0
        %v304 = vpop.trf.xlu0
        %v305 = vpop.trf.xlu0
        %v306 = vpop.trf.xlu0
        %v307 = vpop.trf.xlu0
        %v308 = vpop.trf.xlu0
        %v309 = vpop.trf.xlu0
        %v310 = vpop.trf.xlu0
        %v311 = vpop.trf.xlu0
        %v312 = vpop.trf.xlu0
        %v313 = vpop.trf.xlu0
        %v314 = vpop.trf.xlu0
        %315 = vxpose.xlu0.b32.start [1/16] %v247, 128
        %316 = vxpose.xlu0.b32.cont [2/16] %v248, 128
        %317 = vxpose.xlu0.b32.cont [3/16] 0.0, 128
        %318 = vxpose.xlu0.b32.cont [4/16] 0.0, 128
        %319 = vxpose.xlu0.b32.cont [5/16] 0.0, 128
        %320 = vxpose.xlu0.b32.cont [6/16] 0.0, 128
        %321 = vxpose.xlu0.b32.cont [7/16] 0.0, 128
        %322 = vxpose.xlu0.b32.cont [8/16] 0.0, 128
        %323 = vxpose.xlu0.b32.cont [9/16] 0.0, 128
        %324 = vxpose.xlu0.b32.cont [10/16] 0.0, 128
        %325 = vxpose.xlu0.b32.cont [11/16] 0.0, 128
        %326 = vxpose.xlu0.b32.cont [12/16] 0.0, 128
        %327 = vxpose.xlu0.b32.cont [13/16] 0.0, 128
        %328 = vxpose.xlu0.b32.cont [14/16] 0.0, 128
        %329 = vxpose.xlu0.b32.cont [15/16] 0.0, 128
        %330 = vxpose.xlu0.b32.end [16/16] 0.0, 128
        %v331 = vpop.trf.xlu0
        %v332 = vpop.trf.xlu0
        %v333 = vpop.trf.xlu0
        %v334 = vpop.trf.xlu0
        %v335 = vpop.trf.xlu0
        %v336 = vpop.trf.xlu0
        %v337 = vpop.trf.xlu0
        %v338 = vpop.trf.xlu0
        %v339 = vpop.trf.xlu0
        %v340 = vpop.trf.xlu0
        %v341 = vpop.trf.xlu0
        %v342 = vpop.trf.xlu0
        %v343 = vpop.trf.xlu0
        %v344 = vpop.trf.xlu0
        %v345 = vpop.trf.xlu0
        %v346 = vpop.trf.xlu0
        %347 = vxpose.xlu0.b32.start [1/16] %v249, 128
        %348 = vxpose.xlu0.b32.cont [2/16] %v250, 128
        %349 = vxpose.xlu0.b32.cont [3/16] 0.0, 128
        %350 = vxpose.xlu0.b32.cont [4/16] 0.0, 128
        %351 = vxpose.xlu0.b32.cont [5/16] 0.0, 128
        %352 = vxpose.xlu0.b32.cont [6/16] 0.0, 128
        %353 = vxpose.xlu0.b32.cont [7/16] 0.0, 128
        %354 = vxpose.xlu0.b32.cont [8/16] 0.0, 128
        %355 = vxpose.xlu0.b32.cont [9/16] 0.0, 128
        %356 = vxpose.xlu0.b32.cont [10/16] 0.0, 128
        %357 = vxpose.xlu0.b32.cont [11/16] 0.0, 128
        %358 = vxpose.xlu0.b32.cont [12/16] 0.0, 128
        %359 = vxpose.xlu0.b32.cont [13/16] 0.0, 128
        %360 = vxpose.xlu0.b32.cont [14/16] 0.0, 128
        %361 = vxpose.xlu0.b32.cont [15/16] 0.0, 128
        %362 = vxpose.xlu0.b32.end [16/16] 0.0, 128
        %v363 = vpop.trf.xlu0
        %v364 = vpop.trf.xlu0
        %v365 = vpop.trf.xlu0
        %v366 = vpop.trf.xlu0
        %v367 = vpop.trf.xlu0
        %v368 = vpop.trf.xlu0
        %v369 = vpop.trf.xlu0
        %v370 = vpop.trf.xlu0
        %v371 = vpop.trf.xlu0
        %v372 = vpop.trf.xlu0
        %v373 = vpop.trf.xlu0
        %v374 = vpop.trf.xlu0
        %v375 = vpop.trf.xlu0
        %v376 = vpop.trf.xlu0
        %v377 = vpop.trf.xlu0
        %v378 = vpop.trf.xlu0
        %vm379 = vcmask 130048
        %v381 = vsel %vm379, %v267, 0
        %v384 = vsel %vm379, %v268, 0
        %v387 = vsel %vm379, %v299, 0
        %v390 = vsel %vm379, %v300, 0
        %v393 = vsel %vm379, %v331, 0
        %v396 = vsel %vm379, %v332, 0
        %v399 = vsel %vm379, %v363, 0
        %v402 = vsel %vm379, %v364, 0
        %404 = vmatprep.subr.mxu0 0.0
        %405 = vmatpush1.msra.mxu0 0.0
        %406 = vmatprep.subr.mxu0 0.0
        %407 = vmatpush1.msra.mxu0 0.0
        %408 = vmatprep.subr.mxu0 0.0
        %409 = vmatpush1.msra.mxu0 0.0
        %410 = vmatprep.subr.mxu0 0.0
        %411 = vmatpush1.msra.mxu0 0.0
        %412 = vmatprep.subr.mxu0 0.0
        %413 = vmatpush1.msra.mxu0 0.0
        %414 = vmatprep.subr.mxu0 0.0
        %415 = vmatpush1.msra.mxu0 0.0
        %416 = vmatprep.subr.mxu0 0.0
        %417 = vmatpush1.msra.mxu0 0.0
        %418 = vmatprep.subr.mxu0 0.0
        %419 = vmatpush1.msra.mxu0 0.0
        %420 = vmatprep.subr.mxu0 0.0
        %421 = vmatpush1.msra.mxu0 0.0
        %422 = vmatprep.subr.mxu0 0.0
        %423 = vmatpush1.msra.mxu0 0.0
        %424 = vmatprep.subr.mxu0 0.0
        %425 = vmatpush1.msra.mxu0 0.0
        %426 = vmatprep.subr.mxu0 0.0
        %427 = vmatpush1.msra.mxu0 0.0
        %428 = vmatprep.subr.mxu0 0.0
        %429 = vmatpush1.msra.mxu0 0.0
        %430 = vmatprep.subr.mxu0 0.0
        %431 = vmatpush1.msra.mxu0 0.0
        %432 = vmatprep.subr.mxu0 0.0
        %433 = vmatpush1.msra.mxu0 %v240
        %434 = vmatprep.subr.mxu0 0.0
        %435 = vmatpush1.msra.mxu0 %v239
        %436 = vmatprep.subr.mxu0 0.0
        %437 = vmatpush2.msra.mxu0 0.0
        %438 = vmatprep.subr.mxu0 0.0
        %439 = vmatpush2.msra.mxu0 0.0
        %440 = vmatprep.subr.mxu0 0.0
        %441 = vmatpush2.msra.mxu0 0.0
        %442 = vmatprep.subr.mxu0 0.0
        %443 = vmatpush2.msra.mxu0 0.0
        %444 = vmatprep.subr.mxu0 0.0
        %445 = vmatpush2.msra.mxu0 0.0
        %446 = vmatprep.subr.mxu0 0.0
        %447 = vmatpush2.msra.mxu0 0.0
        %448 = vmatprep.subr.mxu0 0.0
        %449 = vmatpush2.msra.mxu0 0.0
        %450 = vmatprep.subr.mxu0 0.0
        %451 = vmatpush2.msra.mxu0 0.0
        %452 = vmatprep.subr.mxu0 0.0
        %453 = vmatpush2.msra.mxu0 0.0
        %454 = vmatprep.subr.mxu0 0.0
        %455 = vmatpush2.msra.mxu0 0.0
        %456 = vmatprep.subr.mxu0 0.0
        %457 = vmatpush2.msra.mxu0 0.0
        %458 = vmatprep.subr.mxu0 0.0
        %459 = vmatpush2.msra.mxu0 0.0
        %460 = vmatprep.subr.mxu0 0.0
        %461 = vmatpush2.msra.mxu0 0.0
        %462 = vmatprep.subr.mxu0 0.0
        %463 = vmatpush2.msra.mxu0 0.0
        %464 = vmatprep.subr.mxu0 0.0
        %465 = vmatpush2.msra.mxu0 0.0
        %466 = vmatprep.subr.mxu0 0.0
        %467 = vmatpush2.msra.mxu0 0.0
        %468 = vmatprep.mubr.f32.mxu0 0.0
        %469 = vmatmul.mubr.f32.gmra.mxu0 %v381
        %v470 = vpop.f32.mrf.mxu0
        %v471 = vadd.f32 0.0, %v470
        %v472 = vpop.f32.mrf.mxu0
        %473 = vmatprep.mubr.f32.mxu0 0.0
        %474 = vmatmul.mubr.f32.gmra.mxu0 %v384
        %v475 = vpop.f32.mrf.mxu0
        %v476 = vadd.f32 0.0, %v475
        %v477 = vpop.f32.mrf.mxu0
        %478 = vmatprep.mubr.f32.mxu0 0.0
        %479 = vmatmul.mubr.f32.gmra.mxu0 %v387
        %v480 = vpop.f32.mrf.mxu0
        %v481 = vadd.f32 0.0, %v480
        %v482 = vpop.f32.mrf.mxu0
        %483 = vmatprep.mubr.f32.mxu0 0.0
        %484 = vmatmul.mubr.f32.gmra.mxu0 %v390
        %v485 = vpop.f32.mrf.mxu0
        %v486 = vadd.f32 0.0, %v485
        %v487 = vpop.f32.mrf.mxu0
        %488 = vmatprep.mubr.f32.mxu0 0.0
        %489 = vmatmul.mubr.f32.gmra.mxu0 %v393
        %v490 = vpop.f32.mrf.mxu0
        %v491 = vadd.f32 0.0, %v490
        %v492 = vpop.f32.mrf.mxu0
        %493 = vmatprep.mubr.f32.mxu0 0.0
        %494 = vmatmul.mubr.f32.gmra.mxu0 %v396
        %v495 = vpop.f32.mrf.mxu0
        %v496 = vadd.f32 0.0, %v495
        %v497 = vpop.f32.mrf.mxu0
        %498 = vmatprep.mubr.f32.mxu0 0.0
        %499 = vmatmul.mubr.f32.gmra.mxu0 %v399
        %v500 = vpop.f32.mrf.mxu0
        %v501 = vadd.f32 0.0, %v500
        %v502 = vpop.f32.mrf.mxu0
        %503 = vmatprep.mubr.f32.mxu0 0.0
        %504 = vmatmul.mubr.f32.gmra.mxu0 %v402
        %v505 = vpop.f32.mrf.mxu0
        %v506 = vadd.f32 0.0, %v505
        %v507 = vpop.f32.mrf.mxu0
        %508 = vdwg.mxu0
        %509 = vxpose.xlu0.b32.start [1/16] %v471, 128
        %510 = vxpose.xlu0.b32.cont [2/16] %v476, 128
        %511 = vxpose.xlu0.b32.cont [3/16] 0.0, 128
        %512 = vxpose.xlu0.b32.cont [4/16] 0.0, 128
        %513 = vxpose.xlu0.b32.cont [5/16] 0.0, 128
        %514 = vxpose.xlu0.b32.cont [6/16] 0.0, 128
        %515 = vxpose.xlu0.b32.cont [7/16] 0.0, 128
        %516 = vxpose.xlu0.b32.cont [8/16] 0.0, 128
        %517 = vxpose.xlu0.b32.cont [9/16] 0.0, 128
        %518 = vxpose.xlu0.b32.cont [10/16] 0.0, 128
        %519 = vxpose.xlu0.b32.cont [11/16] 0.0, 128
        %520 = vxpose.xlu0.b32.cont [12/16] 0.0, 128
        %521 = vxpose.xlu0.b32.cont [13/16] 0.0, 128
        %522 = vxpose.xlu0.b32.cont [14/16] 0.0, 128
        %523 = vxpose.xlu0.b32.cont [15/16] 0.0, 128
        %524 = vxpose.xlu0.b32.end [16/16] 0.0, 128
        %v525 = vpop.trf.xlu0
        %v526 = vpop.trf.xlu0
        %v527 = vpop.trf.xlu0
        %v528 = vpop.trf.xlu0
        %v529 = vpop.trf.xlu0
        %v530 = vpop.trf.xlu0
        %v531 = vpop.trf.xlu0
        %v532 = vpop.trf.xlu0
        %v533 = vpop.trf.xlu0
        %v534 = vpop.trf.xlu0
        %v535 = vpop.trf.xlu0
        %v536 = vpop.trf.xlu0
        %v537 = vpop.trf.xlu0
        %v538 = vpop.trf.xlu0
        %v539 = vpop.trf.xlu0
        %v540 = vpop.trf.xlu0
        %541 = vxpose.xlu0.b32.start [1/16] %v481, 128
        %542 = vxpose.xlu0.b32.cont [2/16] %v486, 128
        %543 = vxpose.xlu0.b32.cont [3/16] 0.0, 128
        %544 = vxpose.xlu0.b32.cont [4/16] 0.0, 128
        %545 = vxpose.xlu0.b32.cont [5/16] 0.0, 128
        %546 = vxpose.xlu0.b32.cont [6/16] 0.0, 128
        %547 = vxpose.xlu0.b32.cont [7/16] 0.0, 128
        %548 = vxpose.xlu0.b32.cont [8/16] 0.0, 128
        %549 = vxpose.xlu0.b32.cont [9/16] 0.0, 128
        %550 = vxpose.xlu0.b32.cont [10/16] 0.0, 128
        %551 = vxpose.xlu0.b32.cont [11/16] 0.0, 128
        %552 = vxpose.xlu0.b32.cont [12/16] 0.0, 128
        %553 = vxpose.xlu0.b32.cont [13/16] 0.0, 128
        %554 = vxpose.xlu0.b32.cont [14/16] 0.0, 128
        %555 = vxpose.xlu0.b32.cont [15/16] 0.0, 128
        %556 = vxpose.xlu0.b32.end [16/16] 0.0, 128
        %v557 = vpop.trf.xlu0
        %v558 = vpop.trf.xlu0
        %v559 = vpop.trf.xlu0
        %v560 = vpop.trf.xlu0
        %v561 = vpop.trf.xlu0
        %v562 = vpop.trf.xlu0
        %v563 = vpop.trf.xlu0
        %v564 = vpop.trf.xlu0
        %v565 = vpop.trf.xlu0
        %v566 = vpop.trf.xlu0
        %v567 = vpop.trf.xlu0
        %v568 = vpop.trf.xlu0
        %v569 = vpop.trf.xlu0
        %v570 = vpop.trf.xlu0
        %v571 = vpop.trf.xlu0
        %v572 = vpop.trf.xlu0
        %573 = vxpose.xlu0.b32.start [1/16] %v491, 128
        %574 = vxpose.xlu0.b32.cont [2/16] %v496, 128
        %575 = vxpose.xlu0.b32.cont [3/16] 0.0, 128
        %576 = vxpose.xlu0.b32.cont [4/16] 0.0, 128
        %577 = vxpose.xlu0.b32.cont [5/16] 0.0, 128
        %578 = vxpose.xlu0.b32.cont [6/16] 0.0, 128
        %579 = vxpose.xlu0.b32.cont [7/16] 0.0, 128
        %580 = vxpose.xlu0.b32.cont [8/16] 0.0, 128
        %581 = vxpose.xlu0.b32.cont [9/16] 0.0, 128
        %582 = vxpose.xlu0.b32.cont [10/16] 0.0, 128
        %583 = vxpose.xlu0.b32.cont [11/16] 0.0, 128
        %584 = vxpose.xlu0.b32.cont [12/16] 0.0, 128
        %585 = vxpose.xlu0.b32.cont [13/16] 0.0, 128
        %586 = vxpose.xlu0.b32.cont [14/16] 0.0, 128
        %587 = vxpose.xlu0.b32.cont [15/16] 0.0, 128
        %588 = vxpose.xlu0.b32.end [16/16] 0.0, 128
        %v589 = vpop.trf.xlu0
        %v590 = vpop.trf.xlu0
        %v591 = vpop.trf.xlu0
        %v592 = vpop.trf.xlu0
        %v593 = vpop.trf.xlu0
        %v594 = vpop.trf.xlu0
        %v595 = vpop.trf.xlu0
        %v596 = vpop.trf.xlu0
        %v597 = vpop.trf.xlu0
        %v598 = vpop.trf.xlu0
        %v599 = vpop.trf.xlu0
        %v600 = vpop.trf.xlu0
        %v601 = vpop.trf.xlu0
        %v602 = vpop.trf.xlu0
        %v603 = vpop.trf.xlu0
        %v604 = vpop.trf.xlu0
        %605 = vxpose.xlu0.b32.start [1/16] %v501, 128
        %606 = vxpose.xlu0.b32.cont [2/16] %v506, 128
        %607 = vxpose.xlu0.b32.cont [3/16] 0.0, 128
        %608 = vxpose.xlu0.b32.cont [4/16] 0.0, 128
        %609 = vxpose.xlu0.b32.cont [5/16] 0.0, 128
        %610 = vxpose.xlu0.b32.cont [6/16] 0.0, 128
        %611 = vxpose.xlu0.b32.cont [7/16] 0.0, 128
        %612 = vxpose.xlu0.b32.cont [8/16] 0.0, 128
        %613 = vxpose.xlu0.b32.cont [9/16] 0.0, 128
        %614 = vxpose.xlu0.b32.cont [10/16] 0.0, 128
        %615 = vxpose.xlu0.b32.cont [11/16] 0.0, 128
        %616 = vxpose.xlu0.b32.cont [12/16] 0.0, 128
        %617 = vxpose.xlu0.b32.cont [13/16] 0.0, 128
        %618 = vxpose.xlu0.b32.cont [14/16] 0.0, 128
        %619 = vxpose.xlu0.b32.cont [15/16] 0.0, 128
        %620 = vxpose.xlu0.b32.end [16/16] 0.0, 128
        %v621 = vpop.trf.xlu0
        %v622 = vpop.trf.xlu0
        %v623 = vpop.trf.xlu0
        %v624 = vpop.trf.xlu0
        %v625 = vpop.trf.xlu0
        %v626 = vpop.trf.xlu0
        %v627 = vpop.trf.xlu0
        %v628 = vpop.trf.xlu0
        %v629 = vpop.trf.xlu0
        %v630 = vpop.trf.xlu0
        %v631 = vpop.trf.xlu0
        %v632 = vpop.trf.xlu0
        %v633 = vpop.trf.xlu0
        %v634 = vpop.trf.xlu0
        %v635 = vpop.trf.xlu0
        %v636 = vpop.trf.xlu0
        %v638 = vsel %vm379, %v525, 0
        %v641 = vsel %vm379, %v526, 0
        %v644 = vsel %vm379, %v557, 0
        %v647 = vsel %vm379, %v558, 0
        %v650 = vsel %vm379, %v589, 0
        %v653 = vsel %vm379, %v590, 0
        %v656 = vsel %vm379, %v621, 0
        %v659 = vsel %vm379, %v622, 0
        %661 = vmatprep.subr.mxu0 0.0
        %662 = vmatpush1.msra.mxu0 0.0
        %663 = vmatprep.subr.mxu0 0.0
        %664 = vmatpush1.msra.mxu0 0.0
        %665 = vmatprep.subr.mxu0 0.0
        %666 = vmatpush1.msra.mxu0 0.0
        %667 = vmatprep.subr.mxu0 0.0
        %668 = vmatpush1.msra.mxu0 0.0
        %669 = vmatprep.subr.mxu0 0.0
        %670 = vmatpush1.msra.mxu0 0.0
        %671 = vmatprep.subr.mxu0 0.0
        %672 = vmatpush1.msra.mxu0 0.0
        %673 = vmatprep.subr.mxu0 0.0
        %674 = vmatpush1.msra.mxu0 0.0
        %675 = vmatprep.subr.mxu0 0.0
        %676 = vmatpush1.msra.mxu0 0.0
        %677 = vmatprep.subr.mxu0 0.0
        %678 = vmatpush1.msra.mxu0 0.0
        %679 = vmatprep.subr.mxu0 0.0
        %680 = vmatpush1.msra.mxu0 0.0
        %681 = vmatprep.subr.mxu0 0.0
        %682 = vmatpush1.msra.mxu0 0.0
        %683 = vmatprep.subr.mxu0 0.0
        %684 = vmatpush1.msra.mxu0 0.0
        %685 = vmatprep.subr.mxu0 0.0
        %686 = vmatpush1.msra.mxu0 0.0
        %687 = vmatprep.subr.mxu0 0.0
        %688 = vmatpush1.msra.mxu0 0.0
        %689 = vmatprep.subr.mxu0 0.0
        %690 = vmatpush1.msra.mxu0 %v242
        %691 = vmatprep.subr.mxu0 0.0
        %692 = vmatpush1.msra.mxu0 %v241
        %693 = vmatprep.subr.mxu0 0.0
        %694 = vmatpush2.msra.mxu0 0.0
        %695 = vmatprep.subr.mxu0 0.0
        %696 = vmatpush2.msra.mxu0 0.0
        %697 = vmatprep.subr.mxu0 0.0
        %698 = vmatpush2.msra.mxu0 0.0
        %699 = vmatprep.subr.mxu0 0.0
        %700 = vmatpush2.msra.mxu0 0.0
        %701 = vmatprep.subr.mxu0 0.0
        %702 = vmatpush2.msra.mxu0 0.0
        %703 = vmatprep.subr.mxu0 0.0
        %704 = vmatpush2.msra.mxu0 0.0
        %705 = vmatprep.subr.mxu0 0.0
        %706 = vmatpush2.msra.mxu0 0.0
        %707 = vmatprep.subr.mxu0 0.0
        %708 = vmatpush2.msra.mxu0 0.0
        %709 = vmatprep.subr.mxu0 0.0
        %710 = vmatpush2.msra.mxu0 0.0
        %711 = vmatprep.subr.mxu0 0.0
        %712 = vmatpush2.msra.mxu0 0.0
        %713 = vmatprep.subr.mxu0 0.0
        %714 = vmatpush2.msra.mxu0 0.0
        %715 = vmatprep.subr.mxu0 0.0
        %716 = vmatpush2.msra.mxu0 0.0
        %717 = vmatprep.subr.mxu0 0.0
        %718 = vmatpush2.msra.mxu0 0.0
        %719 = vmatprep.subr.mxu0 0.0
        %720 = vmatpush2.msra.mxu0 0.0
        %721 = vmatprep.subr.mxu0 0.0
        %722 = vmatpush2.msra.mxu0 0.0
        %723 = vmatprep.subr.mxu0 0.0
        %724 = vmatpush2.msra.mxu0 0.0
        %725 = vmatprep.mubr.f32.mxu0 0.0
        %726 = vmatmul.mubr.f32.gmra.mxu0 %v638
        %v727 = vpop.f32.mrf.mxu0
        %v728 = vadd.f32 0.0, %v727
        %v729 = vpop.f32.mrf.mxu0
        %730 = vmatprep.mubr.f32.mxu0 0.0
        %731 = vmatmul.mubr.f32.gmra.mxu0 %v641
        %v732 = vpop.f32.mrf.mxu0
        %v733 = vadd.f32 0.0, %v732
        %v734 = vpop.f32.mrf.mxu0
        %735 = vmatprep.mubr.f32.mxu0 0.0
        %736 = vmatmul.mubr.f32.gmra.mxu0 %v644
        %v737 = vpop.f32.mrf.mxu0
        %v738 = vadd.f32 0.0, %v737
        %v739 = vpop.f32.mrf.mxu0
        %740 = vmatprep.mubr.f32.mxu0 0.0
        %741 = vmatmul.mubr.f32.gmra.mxu0 %v647
        %v742 = vpop.f32.mrf.mxu0
        %v743 = vadd.f32 0.0, %v742
        %v744 = vpop.f32.mrf.mxu0
        %745 = vmatprep.mubr.f32.mxu0 0.0
        %746 = vmatmul.mubr.f32.gmra.mxu0 %v650
        %v747 = vpop.f32.mrf.mxu0
        %v748 = vadd.f32 0.0, %v747
        %v749 = vpop.f32.mrf.mxu0
        %750 = vmatprep.mubr.f32.mxu0 0.0
        %751 = vmatmul.mubr.f32.gmra.mxu0 %v653
        %v752 = vpop.f32.mrf.mxu0
        %v753 = vadd.f32 0.0, %v752
        %v754 = vpop.f32.mrf.mxu0
        %755 = vmatprep.mubr.f32.mxu0 0.0
        %756 = vmatmul.mubr.f32.gmra.mxu0 %v656
        %v757 = vpop.f32.mrf.mxu0
        %v758 = vadd.f32 0.0, %v757
        %v759 = vpop.f32.mrf.mxu0
        %760 = vmatprep.mubr.f32.mxu0 0.0
        %761 = vmatmul.mubr.f32.gmra.mxu0 %v659
        %v762 = vpop.f32.mrf.mxu0
        %v763 = vadd.f32 0.0, %v762
        %v764 = vpop.f32.mrf.mxu0
        %765 = vdwg.mxu0
        %766 = vst.msk [vmem:[%s236] sm:$0xff] %vm379, %v728
        %767 = vst.msk [vmem:[%s236 + $0x8] sm:$0xff] %vm379, %v733
        %768 = vst.msk [vmem:[%s236 + $0x10] sm:$0xff] %vm379, %v738
        %769 = vst.msk [vmem:[%s236 + $0x18] sm:$0xff] %vm379, %v743
        %770 = vst.msk [vmem:[%s236 + $0x20] sm:$0xff] %vm379, %v748
        %771 = vst.msk [vmem:[%s236 + $0x28] sm:$0xff] %vm379, %v753
        %772 = vst.msk [vmem:[%s236 + $0x30] sm:$0xff] %vm379, %v758
        %773 = vst.msk [vmem:[%s236 + $0x38] sm:$0xff] %vm379, %v763
        %s774 = sand.u32 %s113, 1
        %s775 = scalar_lea.sflag [#allocation4], %s774
        %s776 = sand.u32 %s113, 1
        %s777 = smul.addr %s776, 64
        %s778 = scalar_lea.vmem [#allocation8], %s777
        // Predicated region
        $region45: #{tpu_custom_call.1} parent=31 // pred_check
          %p779 = pneg %p123
        $region46: #{tpu_custom_call.1} parent=31 // pred_check_branch
          %781 = sbr.rel (%p779) target = $region48
        $region47: #{tpu_custom_call.1} parent=31 // pred_region
          %s782 = smul.u32 4, %s26
          %s784 = ssub.s32 1024, 1024
          %785 = vsyncadd %s775, %s784
          %s786 = smul.addr %s782, 2
          %s787 = smul.addr %s25, 8
          %s788 = sadd.s32 %s786, %s787
          %s789 = smul.addr %s788, 128
          %s790 = scalar_lea.hbm %s3, %s789
          %s791 = sshll.u32 %s778, 4
          %s792 = int_to_ptr.vmem [resolvable:$true] %s791
          %797 = dma.vmem_to_hbm [thread:$0]  %s792, 1024, %s790, %s775, 128, 128, 8
        $region48: #{tpu_custom_call.1} parent=31 // pred_fallthru
          _
      $region32: #{tpu_custom_call.1} parent=5 // pred_fallthru
        _
      %p798 = scmp.le.s32.totalorder 2, %s16
      // Predicated region
      $region49: #{tpu_custom_call.1} parent=5 // pred_check
        %p799 = pneg %p798
      $region50: #{tpu_custom_call.1} parent=5 // pred_check_branch
        %801 = sbr.rel (%p799) target = $region52
      $region51: #{tpu_custom_call.1} parent=5 // pred_region
        %s802 = ssub.s32 %s16, 2
        // Predicated region
        $region53: #{tpu_custom_call.1} parent=51 // pred_check
          %p803 = pneg %p129
        $region54: #{tpu_custom_call.1} parent=51 // pred_check_branch
          %805 = sbr.rel (%p803) target = $region56
        $region55: #{tpu_custom_call.1} parent=51 // pred_region
          %s806 = sand.u32 %s114, 1
          %s807 = scalar_lea.sflag [#allocation4], %s806
          %s808 = sand.u32 %s114, 1
          %s809 = smul.addr %s808, 64
          %s810 = scalar_lea.vmem [#allocation8], %s809
          %811 = dma.done %s807, 1024
        $region56: #{tpu_custom_call.1} parent=51 // pred_fallthru
          _
      $region52: #{tpu_custom_call.1} parent=5 // pred_fallthru
        _
    $region6: #{tpu_custom_call.1} parent=1 // loop_footer
      %s20 = sadd.s32 1, %s16
    $region7: #{tpu_custom_call.1} parent=1 // loop_footer_branch
      %15 = sbr.rel target = $region3
    $region8: #{tpu_custom_call.1} parent=1 // loop_exit
      _
    %812 = vsyncpa [#allocation3], 1
    %s813 = scalar_lea.sflag [#allocation3], 1
    %814 = vsyncpa %s813, 1
    %815 = vsyncpa [#allocation6], 1
    %816 = vsyncpa [#allocation4], 1
    %s817 = scalar_lea.sflag [#allocation4], 1
    %818 = vsyncpa %s817, 1

</llo_original>
